<compile_context>
chip_gen: v7x
topology: tpu7x:2x2x1
jax: 0.10.0
libtpu: 0.0.40
codegen_flags: <defaults>
</compile_context>

<pallas_src>
import jax
import jax.numpy as jnp
from jax.experimental import pallas as pl
from jax.experimental.pallas import tpu as pltpu

LN_EPS = 1e-5


def _round_up(x, m):
    return (x + m - 1) // m * m


def actor_kernel(obs_ref,                      # (TILE_B, repr_dim)  f32
                 w1_ref, b1_ref,               # trunk Linear (w bf16, b f32)
                 g_ref, beta_ref,              # LayerNorm affine (f32)
                 w2_ref, b2_ref,               # policy Linear 1
                 w3_ref, b3_ref,               # policy Linear 2
                 w4_ref, b4_ref,               # policy Linear 3 (lane-padded)
                 mu_ref):                      # (TILE_B, act_pad) f32
    # trunk: Linear -> LayerNorm -> Tanh   (bf16 matmul operands, f32 accum)
    x = obs_ref[...].astype(jnp.bfloat16)
    h = jnp.dot(x, w1_ref[...], preferred_element_type=jnp.float32) + b1_ref[...]

    # LayerNorm statistics / rsqrt / tanh strictly in f32 (EUP handles
    # rsqrt/tanh in their own bundle slot, essentially free next to the MXU).
    mean = jnp.mean(h, axis=-1, keepdims=True)
    centered = h - mean
    var = jnp.mean(centered * centered, axis=-1, keepdims=True)
    h = centered * jax.lax.rsqrt(var + LN_EPS)
    h = h * g_ref[...] + beta_ref[...]
    h = jnp.tanh(h)

    # policy MLP: Linear -> ReLU -> Linear -> ReLU -> Linear -> tanh
    h = jnp.dot(h.astype(jnp.bfloat16), w2_ref[...],
                preferred_element_type=jnp.float32) + b2_ref[...]
    h = jnp.maximum(h, 0.0)
    h = jnp.dot(h.astype(jnp.bfloat16), w3_ref[...],
                preferred_element_type=jnp.float32) + b3_ref[...]
    h = jnp.maximum(h, 0.0)
    mu = jnp.dot(h.astype(jnp.bfloat16), w4_ref[...],
                 preferred_element_type=jnp.float32) + b4_ref[...]
    mu_ref[...] = jnp.tanh(mu).astype(mu_ref.dtype)


def actor_forward(obs, std_scalar, params, tile_b=128):
    """Returns (mu, std) — the parameters of utils.TruncatedNormal(mu, std)."""
    B, repr_dim = obs.shape
    feature_dim = params["w1"].shape[1]
    hidden_dim = params["w2"].shape[1]
    action_dim = params["w4"].shape[1]

    # Batch tiling: multiple of 8 rows, pad batch to a whole number of tiles.
    tile_b = min(tile_b, _round_up(B, 8))
    Bp = _round_up(B, tile_b)
    if Bp != B:
        obs = jnp.pad(obs, ((0, Bp - B), (0, 0)))
    grid = (Bp // tile_b,)

    # Lane-pad the final layer so the mu output slab is a multiple of 128
    # (unmasked vector stores on the output).
    act_pad = _round_up(action_dim, 128)
    w4p = jnp.zeros((hidden_dim, act_pad), jnp.float32).at[:, :action_dim].set(
        params["w4"])
    b4p = jnp.zeros((1, act_pad), jnp.float32).at[:, :action_dim].set(
        params["b4"])

    # bf16 weights for the MXU (halves weight DMA/VMEM); biases/LN stay f32.
    w1 = params["w1"].astype(jnp.bfloat16)
    w2 = params["w2"].astype(jnp.bfloat16)
    w3 = params["w3"].astype(jnp.bfloat16)
    w4p = w4p.astype(jnp.bfloat16)

    # VMEM budget: resident weights + double-buffered obs/mu blocks + slack.
    weight_bytes = (w1.size + w2.size + w3.size + w4p.size) * 2 + \
        (params["b1"].size + params["b2"].size + params["b3"].size +
         b4p.size + params["gamma"].size + params["beta"].size) * 4
    io_bytes = 2 * tile_b * repr_dim * 4 + 2 * tile_b * act_pad * 4
    vmem_limit = int(min(max(weight_bytes + io_bytes + (4 << 20), 32 << 20),
                         64 << 20))

    flops = 2 * Bp * (repr_dim * feature_dim + feature_dim * hidden_dim +
                      hidden_dim * hidden_dim + hidden_dim * act_pad)
    transcendentals = Bp * (feature_dim + act_pad)
    bytes_accessed = (Bp * repr_dim * 4 + weight_bytes + Bp * act_pad * 4)

    const = lambda i: (0, 0)
    mu = pl.pallas_call(
        actor_kernel,
        out_shape=jax.ShapeDtypeStruct((Bp, act_pad), jnp.float32),
        grid=grid,
        in_specs=[
            pl.BlockSpec((tile_b, repr_dim), lambda i: (i, 0)),     # obs (tiled)
            pl.BlockSpec((repr_dim, feature_dim), const),           # w1
            pl.BlockSpec((1, feature_dim), const),                  # b1
            pl.BlockSpec((1, feature_dim), const),                  # gamma
            pl.BlockSpec((1, feature_dim), const),                  # beta
            pl.BlockSpec((feature_dim, hidden_dim), const),         # w2
            pl.BlockSpec((1, hidden_dim), const),                   # b2
            pl.BlockSpec((hidden_dim, hidden_dim), const),          # w3
            pl.BlockSpec((1, hidden_dim), const),                   # b3
            pl.BlockSpec((hidden_dim, act_pad), const),             # w4 (padded)
            pl.BlockSpec((1, act_pad), const),                      # b4 (padded)
        ],
        out_specs=pl.BlockSpec((tile_b, act_pad), lambda i: (i, 0)),
        compiler_params=pltpu.CompilerParams(
            dimension_semantics=("parallel",),
            vmem_limit_bytes=vmem_limit,
        ),
        cost_estimate=pl.CostEstimate(
            flops=flops,
            transcendentals=transcendentals,
            bytes_accessed=bytes_accessed,
        ),
    )(
        obs,
        w1, params["b1"],
        params["gamma"], params["beta"],
        w2, params["b2"],
        w3, params["b3"],
        w4p, b4p,
    )

    mu = mu[:B, :action_dim]
    # std = torch.ones_like(mu) * std  -> trivial constant, done in plain JAX.
    std = jnp.full((B, action_dim), std_scalar, dtype=jnp.float32)
    # TODO(synk): utils.TruncatedNormal distribution object has no Pallas
    # equivalent; we return its parameters (mu, std).
    return mu, std


def init_params(key, repr_dim, feature_dim, hidden_dim, action_dim):
    """Deterministic synthetic init (stand-in for utils.weight_init)."""
    ks = jax.random.split(key, 4)

    def lin(k, fan_in, fan_out):
        w = jax.random.normal(k, (fan_in, fan_out), jnp.float32) / jnp.sqrt(fan_in)
        b = jnp.zeros((1, fan_out), jnp.float32)
        return w, b

    w1, b1 = lin(ks[0], repr_dim, feature_dim)
    w2, b2 = lin(ks[1], feature_dim, hidden_dim)
    w3, b3 = lin(ks[2], hidden_dim, hidden_dim)
    w4, b4 = lin(ks[3], hidden_dim, action_dim)
    return {
        "w1": w1, "b1": b1,
        "gamma": jnp.ones((1, feature_dim), jnp.float32),
        "beta": jnp.zeros((1, feature_dim), jnp.float32),
        "w2": w2, "b2": b2,
        "w3": w3, "b3": b3,
        "w4": w4, "b4": b4,
    }


if __name__ == "__main__":
    B, REPR_DIM, FEATURE_DIM, HIDDEN_DIM, ACTION_DIM = 8, 64, 32, 32, 4

    key = jax.random.PRNGKey(0)
    k_obs, k_par = jax.random.split(key)
    obs = jax.random.normal(k_obs, (B, REPR_DIM), jnp.float32)
    params = init_params(k_par, REPR_DIM, FEATURE_DIM, HIDDEN_DIM, ACTION_DIM)
    std = 0.1

    mu, std_out = actor_forward(obs, std, params)
    jax.block_until_ready((mu, std_out))

    # Reference 1: plain-JAX with matching bf16 matmul operands (tight check).
    # Reference 2: full f32 (loose check that bf16 hasn't wrecked accuracy).
    def ref_forward(cast):
        x = cast(obs)
        h = jnp.dot(x, cast(params["w1"]),
                    preferred_element_type=jnp.float32) + params["b1"]
        m = h.mean(-1, keepdims=True)
        v = ((h - m) ** 2).mean(-1, keepdims=True)
        h = (h - m) / jnp.sqrt(v + LN_EPS) * params["gamma"] + params["beta"]
        h = jnp.tanh(h)
        h = jnp.maximum(jnp.dot(cast(h), cast(params["w2"]),
                                preferred_element_type=jnp.float32) + params["b2"], 0)
        h = jnp.maximum(jnp.dot(cast(h), cast(params["w3"]),
                                preferred_element_type=jnp.float32) + params["b3"], 0)
        return jnp.tanh(jnp.dot(cast(h), cast(params["w4"]),
                                preferred_element_type=jnp.float32) + params["b4"])

    mu_ref_bf16 = ref_forward(lambda a: a.astype(jnp.bfloat16))
    mu_ref_f32 = ref_forward(lambda a: a)

    assert mu.shape == (B, ACTION_DIM)
    assert jnp.allclose(mu, mu_ref_bf16, atol=2e-3), "mu mismatch (bf16 ref)"
    assert jnp.allclose(mu, mu_ref_f32, atol=5e-2), "mu mismatch (f32 ref)"
    assert jnp.allclose(std_out, jnp.full_like(mu_ref_f32, std)), "std mismatch"

    print("KERNEL_OK")
</pallas_src>

<mosaic_0001>
module attributes {stable_mosaic.version = 11 : i64} {
  func.func @actor_kernel(%arg0: i32, %arg1: memref<8x64xf32, #tpu.memory_space<vmem>>, %arg2: memref<64x32xbf16, #tpu.memory_space<vmem>>, %arg3: memref<1x32xf32, #tpu.memory_space<vmem>>, %arg4: memref<1x32xf32, #tpu.memory_space<vmem>>, %arg5: memref<1x32xf32, #tpu.memory_space<vmem>>, %arg6: memref<32x32xbf16, #tpu.memory_space<vmem>>, %arg7: memref<1x32xf32, #tpu.memory_space<vmem>>, %arg8: memref<32x32xbf16, #tpu.memory_space<vmem>>, %arg9: memref<1x32xf32, #tpu.memory_space<vmem>>, %arg10: memref<32x128xbf16, #tpu.memory_space<vmem>>, %arg11: memref<1x128xf32, #tpu.memory_space<vmem>>, %arg12: memref<8x128xf32, #tpu.memory_space<vmem>>) attributes {dimension_semantics = [#tpu.dimension_semantics<parallel>], iteration_bounds = array<i64: 1>, scalar_prefetch = 0 : i64, scratch_operands = 0 : i64, tpu.core_type = #tpu.core_type<tc>, window_params = [{transform_indices = @transform_0, window_bounds = array<i64: 8, 64>}, {pipeline_mode = #tpu.pipeline_mode<synchronous>, transform_indices = @transform_1, window_bounds = array<i64: 64, 32>}, {pipeline_mode = #tpu.pipeline_mode<synchronous>, transform_indices = @transform_2, window_bounds = array<i64: 1, 32>}, {pipeline_mode = #tpu.pipeline_mode<synchronous>, transform_indices = @transform_3, window_bounds = array<i64: 1, 32>}, {pipeline_mode = #tpu.pipeline_mode<synchronous>, transform_indices = @transform_4, window_bounds = array<i64: 1, 32>}, {pipeline_mode = #tpu.pipeline_mode<synchronous>, transform_indices = @transform_5, window_bounds = array<i64: 32, 32>}, {pipeline_mode = #tpu.pipeline_mode<synchronous>, transform_indices = @transform_6, window_bounds = array<i64: 1, 32>}, {pipeline_mode = #tpu.pipeline_mode<synchronous>, transform_indices = @transform_7, window_bounds = array<i64: 32, 32>}, {pipeline_mode = #tpu.pipeline_mode<synchronous>, transform_indices = @transform_8, window_bounds = array<i64: 1, 32>}, {pipeline_mode = #tpu.pipeline_mode<synchronous>, transform_indices = @transform_9, window_bounds = array<i64: 32, 128>}, {pipeline_mode = #tpu.pipeline_mode<synchronous>, transform_indices = @transform_10, window_bounds = array<i64: 1, 128>}, {transform_indices = @transform_11, window_bounds = array<i64: 8, 128>}]} {
    %c0 = arith.constant 0 : index
    %c0_0 = arith.constant 0 : index
    %0 = vector.load %arg1[%c0, %c0_0] : memref<8x64xf32, #tpu.memory_space<vmem>>, vector<8x64xf32>
    %1 = arith.truncf %0 : vector<8x64xf32> to vector<8x64xbf16>
    %c0_1 = arith.constant 0 : index
    %c0_2 = arith.constant 0 : index
    %2 = vector.load %arg2[%c0_1, %c0_2] : memref<64x32xbf16, #tpu.memory_space<vmem>>, vector<64x32xbf16>
    %cst = arith.constant dense<0.000000e+00> : vector<8x32xf32>
    %3 = tpu.matmul %1, %2, %cst {dimension_numbers = #tpu.dot_dimension_numbers<[1], [0], [0], [1], [0, 0, 1, 1], [], []>} : vector<8x64xbf16>, vector<64x32xbf16>, vector<8x32xf32> -> vector<8x32xf32>
    %c0_3 = arith.constant 0 : index
    %c0_4 = arith.constant 0 : index
    %4 = vector.load %arg3[%c0_3, %c0_4] : memref<1x32xf32, #tpu.memory_space<vmem>>, vector<1x32xf32>
    %5 = vector.broadcast %4 : vector<1x32xf32> to vector<8x32xf32>
    %6 = arith.addf %3, %5 : vector<8x32xf32>
    %cst_5 = arith.constant dense<0.000000e+00> : vector<8xf32>
    %7 = vector.multi_reduction <add>, %6, %cst_5 [1] : vector<8x32xf32> to vector<8xf32>
    %8 = vector.shape_cast %7 : vector<8xf32> to vector<8x1xf32>
    %cst_6 = arith.constant 3.200000e+01 : f32
    %9 = vector.broadcast %cst_6 : f32 to vector<8x1xf32>
    %10 = arith.divf %8, %9 : vector<8x1xf32>
    %11 = vector.broadcast %10 : vector<8x1xf32> to vector<8x32xf32>
    %12 = arith.subf %6, %11 : vector<8x32xf32>
    %13 = arith.mulf %12, %12 : vector<8x32xf32>
    %cst_7 = arith.constant dense<0.000000e+00> : vector<8xf32>
    %14 = vector.multi_reduction <add>, %13, %cst_7 [1] : vector<8x32xf32> to vector<8xf32>
    %15 = vector.shape_cast %14 : vector<8xf32> to vector<8x1xf32>
    %cst_8 = arith.constant 3.200000e+01 : f32
    %16 = vector.broadcast %cst_8 : f32 to vector<8x1xf32>
    %17 = arith.divf %15, %16 : vector<8x1xf32>
    %cst_9 = arith.constant 9.99999974E-6 : f32
    %18 = vector.broadcast %cst_9 : f32 to vector<8x1xf32>
    %19 = arith.addf %17, %18 : vector<8x1xf32>
    %20 = math.rsqrt %19 : vector<8x1xf32>
    %21 = vector.broadcast %20 : vector<8x1xf32> to vector<8x32xf32>
    %22 = arith.mulf %12, %21 : vector<8x32xf32>
    %c0_10 = arith.constant 0 : index
    %c0_11 = arith.constant 0 : index
    %23 = vector.load %arg4[%c0_10, %c0_11] : memref<1x32xf32, #tpu.memory_space<vmem>>, vector<1x32xf32>
    %24 = vector.broadcast %23 : vector<1x32xf32> to vector<8x32xf32>
    %25 = arith.mulf %22, %24 : vector<8x32xf32>
    %c0_12 = arith.constant 0 : index
    %c0_13 = arith.constant 0 : index
    %26 = vector.load %arg5[%c0_12, %c0_13] : memref<1x32xf32, #tpu.memory_space<vmem>>, vector<1x32xf32>
    %27 = vector.broadcast %26 : vector<1x32xf32> to vector<8x32xf32>
    %28 = arith.addf %25, %27 : vector<8x32xf32>
    %29 = math.tanh %28 : vector<8x32xf32>
    %30 = arith.truncf %29 : vector<8x32xf32> to vector<8x32xbf16>
    %c0_14 = arith.constant 0 : index
    %c0_15 = arith.constant 0 : index
    %31 = vector.load %arg6[%c0_14, %c0_15] : memref<32x32xbf16, #tpu.memory_space<vmem>>, vector<32x32xbf16>
    %cst_16 = arith.constant dense<0.000000e+00> : vector<8x32xf32>
    %32 = tpu.matmul %30, %31, %cst_16 {dimension_numbers = #tpu.dot_dimension_numbers<[1], [0], [0], [1], [0, 0, 1, 1], [], []>} : vector<8x32xbf16>, vector<32x32xbf16>, vector<8x32xf32> -> vector<8x32xf32>
    %c0_17 = arith.constant 0 : index
    %c0_18 = arith.constant 0 : index
    %33 = vector.load %arg7[%c0_17, %c0_18] : memref<1x32xf32, #tpu.memory_space<vmem>>, vector<1x32xf32>
    %34 = vector.broadcast %33 : vector<1x32xf32> to vector<8x32xf32>
    %35 = arith.addf %32, %34 : vector<8x32xf32>
    %cst_19 = arith.constant 0.000000e+00 : f32
    %36 = vector.broadcast %cst_19 : f32 to vector<8x32xf32>
    %37 = arith.maximumf %35, %36 : vector<8x32xf32>
    %38 = arith.truncf %37 : vector<8x32xf32> to vector<8x32xbf16>
    %c0_20 = arith.constant 0 : index
    %c0_21 = arith.constant 0 : index
    %39 = vector.load %arg8[%c0_20, %c0_21] : memref<32x32xbf16, #tpu.memory_space<vmem>>, vector<32x32xbf16>
    %cst_22 = arith.constant dense<0.000000e+00> : vector<8x32xf32>
    %40 = tpu.matmul %38, %39, %cst_22 {dimension_numbers = #tpu.dot_dimension_numbers<[1], [0], [0], [1], [0, 0, 1, 1], [], []>} : vector<8x32xbf16>, vector<32x32xbf16>, vector<8x32xf32> -> vector<8x32xf32>
    %c0_23 = arith.constant 0 : index
    %c0_24 = arith.constant 0 : index
    %41 = vector.load %arg9[%c0_23, %c0_24] : memref<1x32xf32, #tpu.memory_space<vmem>>, vector<1x32xf32>
    %42 = vector.broadcast %41 : vector<1x32xf32> to vector<8x32xf32>
    %43 = arith.addf %40, %42 : vector<8x32xf32>
    %cst_25 = arith.constant 0.000000e+00 : f32
    %44 = vector.broadcast %cst_25 : f32 to vector<8x32xf32>
    %45 = arith.maximumf %43, %44 : vector<8x32xf32>
    %46 = arith.truncf %45 : vector<8x32xf32> to vector<8x32xbf16>
    %c0_26 = arith.constant 0 : index
    %c0_27 = arith.constant 0 : index
    %47 = vector.load %arg10[%c0_26, %c0_27] : memref<32x128xbf16, #tpu.memory_space<vmem>>, vector<32x128xbf16>
    %cst_28 = arith.constant dense<0.000000e+00> : vector<8x128xf32>
    %48 = tpu.matmul %46, %47, %cst_28 {dimension_numbers = #tpu.dot_dimension_numbers<[1], [0], [0], [1], [0, 0, 1, 1], [], []>} : vector<8x32xbf16>, vector<32x128xbf16>, vector<8x128xf32> -> vector<8x128xf32>
    %c0_29 = arith.constant 0 : index
    %c0_30 = arith.constant 0 : index
    %49 = vector.load %arg11[%c0_29, %c0_30] : memref<1x128xf32, #tpu.memory_space<vmem>>, vector<1x128xf32>
    %50 = vector.broadcast %49 : vector<1x128xf32> to vector<8x128xf32>
    %51 = arith.addf %48, %50 : vector<8x128xf32>
    %52 = math.tanh %51 : vector<8x128xf32>
    %c0_31 = arith.constant 0 : index
    %c0_32 = arith.constant 0 : index
    %53 = vector.load %arg12[%c0_31, %c0_32] : memref<8x128xf32, #tpu.memory_space<vmem>>, vector<8x128xf32>
    tpu.vector_store %arg12[%c0_31, %c0_32], %52 {strides = array<i32>} : memref<8x128xf32, #tpu.memory_space<vmem>>, vector<8x128xf32>,
    return
  }
  func.func @transform_0(%arg0: i32) -> (i32, i32) {
    %c0_i32 = arith.constant 0 : i32
    %c0_i32_0 = arith.constant 0 : i32
    return %arg0, %c0_i32 : i32, i32
  }
  func.func @transform_1(%arg0: i32) -> (i32, i32) {
    %c0_i32 = arith.constant 0 : i32
    %c0_i32_0 = arith.constant 0 : i32
    %c0_i32_1 = arith.constant 0 : i32
    return %c0_i32, %c0_i32_0 : i32, i32
  }
  func.func @transform_2(%arg0: i32) -> (i32, i32) {
    %c0_i32 = arith.constant 0 : i32
    %c0_i32_0 = arith.constant 0 : i32
    %c0_i32_1 = arith.constant 0 : i32
    return %c0_i32, %c0_i32_0 : i32, i32
  }
  func.func @transform_3(%arg0: i32) -> (i32, i32) {
    %c0_i32 = arith.constant 0 : i32
    %c0_i32_0 = arith.constant 0 : i32
    %c0_i32_1 = arith.constant 0 : i32
    return %c0_i32, %c0_i32_0 : i32, i32
  }
  func.func @transform_4(%arg0: i32) -> (i32, i32) {
    %c0_i32 = arith.constant 0 : i32
    %c0_i32_0 = arith.constant 0 : i32
    %c0_i32_1 = arith.constant 0 : i32
    return %c0_i32, %c0_i32_0 : i32, i32
  }
  func.func @transform_5(%arg0: i32) -> (i32, i32) {
    %c0_i32 = arith.constant 0 : i32
    %c0_i32_0 = arith.constant 0 : i32
    %c0_i32_1 = arith.constant 0 : i32
    return %c0_i32, %c0_i32_0 : i32, i32
  }
  func.func @transform_6(%arg0: i32) -> (i32, i32) {
    %c0_i32 = arith.constant 0 : i32
    %c0_i32_0 = arith.constant 0 : i32
    %c0_i32_1 = arith.constant 0 : i32
    return %c0_i32, %c0_i32_0 : i32, i32
  }
  func.func @transform_7(%arg0: i32) -> (i32, i32) {
    %c0_i32 = arith.constant 0 : i32
    %c0_i32_0 = arith.constant 0 : i32
    %c0_i32_1 = arith.constant 0 : i32
    return %c0_i32, %c0_i32_0 : i32, i32
  }
  func.func @transform_8(%arg0: i32) -> (i32, i32) {
    %c0_i32 = arith.constant 0 : i32
    %c0_i32_0 = arith.constant 0 : i32
    %c0_i32_1 = arith.constant 0 : i32
    return %c0_i32, %c0_i32_0 : i32, i32
  }
  func.func @transform_9(%arg0: i32) -> (i32, i32) {
    %c0_i32 = arith.constant 0 : i32
    %c0_i32_0 = arith.constant 0 : i32
    %c0_i32_1 = arith.constant 0 : i32
    return %c0_i32, %c0_i32_0 : i32, i32
  }
  func.func @transform_10(%arg0: i32) -> (i32, i32) {
    %c0_i32 = arith.constant 0 : i32
    %c0_i32_0 = arith.constant 0 : i32
    %c0_i32_1 = arith.constant 0 : i32
    return %c0_i32, %c0_i32_0 : i32, i32
  }
  func.func @transform_11(%arg0: i32) -> (i32, i32) {
    %c0_i32 = arith.constant 0 : i32
    %c0_i32_0 = arith.constant 0 : i32
    return %arg0, %c0_i32 : i32, i32
  }
}

</mosaic_0001>

<llo_original>
// kernel: tpu_custom_call.1
$region0: #{tpu_custom_call.1}
  #allocation0 [shape = 'u32[]', space=smem, size = 0x4, offset = 0x4, fixed_abs, tag = 'smem constant byte address 0x4 - core index']
  #allocation1 [shape = 'u32[144,128]{1,0:T(1,128)}', space=vmem, size = 0x12000, scoped, tag = 'internal scratch']
  %s0 = inlined_call_operand.hbm [shape: f32[8,64], index: 0, kind: input, shape index: {}]
  %s1 = inlined_call_operand.vmem [shape: bf16[64,32], index: 1, kind: input, shape index: {}]
  %s2 = inlined_call_operand.vmem [shape: f32[1,32], index: 2, kind: input, shape index: {}]
  %s3 = inlined_call_operand.vmem [shape: f32[1,32], index: 3, kind: input, shape index: {}]
  %s4 = inlined_call_operand.vmem [shape: f32[1,32], index: 4, kind: input, shape index: {}]
  %s5 = inlined_call_operand.vmem [shape: bf16[32,32], index: 5, kind: input, shape index: {}]
  %s6 = inlined_call_operand.vmem [shape: f32[1,32], index: 6, kind: input, shape index: {}]
  %s7 = inlined_call_operand.vmem [shape: bf16[32,32], index: 7, kind: input, shape index: {}]
  %s8 = inlined_call_operand.vmem [shape: f32[1,32], index: 8, kind: input, shape index: {}]
  %s9 = inlined_call_operand.vmem [shape: bf16[32,128], index: 9, kind: input, shape index: {}]
  %s10 = inlined_call_operand.vmem [shape: f32[1,128], index: 10, kind: input, shape index: {}]
  %s11 = inlined_call_operand.hbm [shape: f32[8,128], index: 11, kind: output, shape index: {}]
  %s12 = sld [smem:[#allocation0]]
  $region58: #{tpu_custom_call.1} parent=0
    _
  %s14 = ssub.s32 1, %s12
  %s15 = scalar_select 0, %s14, %s12
  $region1: #{tpu_custom_call.1} parent=0
    #allocation2 [shape = 'u8[4096]{0}', space=vmem, size = 0x1000, scoped, tag = 'input window, operand 0, single buffered']
    #allocation3 [shape = 's32[1]{0}', space=sflag, size = 0x4, scoped, tag = 'scoped memory for tpu_custom_call.1']
    #allocation4 [shape = 's32[1]{0}', space=sflag, size = 0x4, scoped, tag = 'scoped memory for tpu_custom_call.1']
    #allocation5 [shape = 'u8[4096]{0}', space=vmem, size = 0x1000, scoped, tag = 'output window, operand 0, single buffered']
    %16 = vsyncpa [#allocation3], 0
    %17 = vsyncpa [#allocation4], 0
    // Predicated region
    $region2: #{tpu_custom_call.1} parent=1 // pred_check
      _
    $region3: #{tpu_custom_call.1} parent=1 // pred_check_branch
      %19 = sbr.rel (0) target = $region5
    $region4: #{tpu_custom_call.1} parent=1 // pred_region
      %s21 = ssub.s32 128, 128
      %22 = vsyncadd [#allocation3], %s21
      %s24 = sshll.u32 [#allocation2], 4
      %s25 = int_to_ptr.vmem [resolvable:$true] %s24
      %27 = dma.hbm_to_vmem [thread:$0]  %s0, 128, %s25, [#allocation3]
    $region5: #{tpu_custom_call.1} parent=1 // pred_fallthru
      _
    // Predicated region
    $region6: #{tpu_custom_call.1} parent=1 // pred_check
      _
    $region7: #{tpu_custom_call.1} parent=1 // pred_check_branch
      %29 = sbr.rel (0) target = $region9
    $region8: #{tpu_custom_call.1} parent=1 // pred_region
      _
    $region9: #{tpu_custom_call.1} parent=1 // pred_fallthru
      _
    // Predicated region
    $region10: #{tpu_custom_call.1} parent=1 // pred_check
      _
    $region11: #{tpu_custom_call.1} parent=1 // pred_check_branch
      %31 = sbr.rel (0) target = $region13
    $region12: #{tpu_custom_call.1} parent=1 // pred_region
      _
    $region13: #{tpu_custom_call.1} parent=1 // pred_fallthru
      _
    // Predicated region
    $region14: #{tpu_custom_call.1} parent=1 // pred_check
      _
    $region15: #{tpu_custom_call.1} parent=1 // pred_check_branch
      %33 = sbr.rel (0) target = $region17
    $region16: #{tpu_custom_call.1} parent=1 // pred_region
      _
    $region17: #{tpu_custom_call.1} parent=1 // pred_fallthru
      _
    // Predicated region
    $region18: #{tpu_custom_call.1} parent=1 // pred_check
      _
    $region19: #{tpu_custom_call.1} parent=1 // pred_check_branch
      %35 = sbr.rel (0) target = $region21
    $region20: #{tpu_custom_call.1} parent=1 // pred_region
      _
    $region21: #{tpu_custom_call.1} parent=1 // pred_fallthru
      _
    // Predicated region
    $region22: #{tpu_custom_call.1} parent=1 // pred_check
      _
    $region23: #{tpu_custom_call.1} parent=1 // pred_check_branch
      %37 = sbr.rel (0) target = $region25
    $region24: #{tpu_custom_call.1} parent=1 // pred_region
      _
    $region25: #{tpu_custom_call.1} parent=1 // pred_fallthru
      _
    // Predicated region
    $region26: #{tpu_custom_call.1} parent=1 // pred_check
      _
    $region27: #{tpu_custom_call.1} parent=1 // pred_check_branch
      %39 = sbr.rel (0) target = $region29
    $region28: #{tpu_custom_call.1} parent=1 // pred_region
      _
    $region29: #{tpu_custom_call.1} parent=1 // pred_fallthru
      _
    // Predicated region
    $region30: #{tpu_custom_call.1} parent=1 // pred_check
      _
    $region31: #{tpu_custom_call.1} parent=1 // pred_check_branch
      %41 = sbr.rel (0) target = $region33
    $region32: #{tpu_custom_call.1} parent=1 // pred_region
      _
    $region33: #{tpu_custom_call.1} parent=1 // pred_fallthru
      _
    // Predicated region
    $region34: #{tpu_custom_call.1} parent=1 // pred_check
      _
    $region35: #{tpu_custom_call.1} parent=1 // pred_check_branch
      %43 = sbr.rel (0) target = $region37
    $region36: #{tpu_custom_call.1} parent=1 // pred_region
      _
    $region37: #{tpu_custom_call.1} parent=1 // pred_fallthru
      _
    // Predicated region
    $region38: #{tpu_custom_call.1} parent=1 // pred_check
      _
    $region39: #{tpu_custom_call.1} parent=1 // pred_check_branch
      %45 = sbr.rel (0) target = $region41
    $region40: #{tpu_custom_call.1} parent=1 // pred_region
      _
    $region41: #{tpu_custom_call.1} parent=1 // pred_fallthru
      _
    // Predicated region
    $region42: #{tpu_custom_call.1} parent=1 // pred_check
      _
    $region43: #{tpu_custom_call.1} parent=1 // pred_check_branch
      %47 = sbr.rel (0) target = $region45
    $region44: #{tpu_custom_call.1} parent=1 // pred_region
      _
    $region45: #{tpu_custom_call.1} parent=1 // pred_fallthru
      _
    // Predicated region
    $region46: #{tpu_custom_call.1} parent=1 // pred_check
      _
    $region47: #{tpu_custom_call.1} parent=1 // pred_check_branch
      %49 = sbr.rel (0) target = $region49
    $region48: #{tpu_custom_call.1} parent=1 // pred_region
      %50 = dma.done [#allocation3], 128
    $region49: #{tpu_custom_call.1} parent=1 // pred_fallthru
      _
    %v52 = vld [vmem:[#allocation2] sm:$0xff]
    %v53 = vpack.c.bf16 %v52, %v52
    %v54 = vld [vmem:[%s1] sm:$0xf]
    %v55 = vld [vmem:[%s1 + $0x4] sm:$0xf]
    %v56 = vld [vmem:[%s1 + $0x8] sm:$0xf]
    %v57 = vld [vmem:[%s1 + $0xc] sm:$0xf]
    %v58 = vld [vmem:[%s1 + $0x10] sm:$0xf]
    %v59 = vld [vmem:[%s1 + $0x14] sm:$0xf]
    %v60 = vld [vmem:[%s1 + $0x18] sm:$0xf]
    %v61 = vld [vmem:[%s1 + $0x1c] sm:$0xf]
    %v62 = vld [vmem:[%s2] sm:$0x1]
    %v64 = vlaneseq
    %v65 = vshrl.u32 %v64, 7
    %v66 = vsub.s32 0, %v65
    %v67 = vrot.slane %v62, %v66
    %v77 = vunpack.c.l.b16 %v54
    %v78 = vunpack.c.l.b16 %v55
    %v79 = vunpack.c.l.b16 %v56
    %v80 = vunpack.c.l.b16 %v57
    %v81 = vunpack.c.l.b16 %v58
    %v82 = vunpack.c.l.b16 %v59
    %v83 = vunpack.c.l.b16 %v60
    %v84 = vunpack.c.l.b16 %v61
    %v85 = vpack.c.b16 %v78, %v77
    %v86 = vpack.c.b16 %v80, %v79
    %v87 = vpack.c.b16 %v82, %v81
    %v88 = vpack.c.b16 %v84, %v83
    %vm93 = vcmask 523264
    %v95 = vsel %vm93, %v53, 0
    %97 = vmatprep.subr.bf16.mxu0 0
    %98 = vmatpush1.bf16.msra.mxu0 %v85
    %99 = vmatprep.subr.bf16.mxu0 0
    %100 = vmatpush1.bf16.msra.mxu0 %v86
    %101 = vmatprep.subr.bf16.mxu0 0
    %102 = vmatpush1.bf16.msra.mxu0 %v87
    %103 = vmatprep.subr.bf16.mxu0 0
    %104 = vmatpush1.bf16.msra.mxu0 %v88
    %105 = vmatprep.subr.bf16.mxu0 0
    %106 = vmatpush1.bf16.msra.mxu0 0
    %107 = vmatprep.subr.bf16.mxu0 0
    %108 = vmatpush1.bf16.msra.mxu0 0
    %109 = vmatprep.subr.bf16.mxu0 0
    %110 = vmatpush1.bf16.msra.mxu0 0
    %111 = vmatprep.subr.bf16.mxu0 0
    %112 = vmatpush1.bf16.msra.mxu0 0
    %113 = vmatprep.subr.bf16.mxu0 0
    %114 = vmatpush1.bf16.msra.mxu0 0
    %115 = vmatprep.subr.bf16.mxu0 0
    %116 = vmatpush1.bf16.msra.mxu0 0
    %117 = vmatprep.subr.bf16.mxu0 0
    %118 = vmatpush1.bf16.msra.mxu0 0
    %119 = vmatprep.subr.bf16.mxu0 0
    %120 = vmatpush1.bf16.msra.mxu0 0
    %121 = vmatprep.subr.bf16.mxu0 0
    %122 = vmatpush1.bf16.msra.mxu0 0
    %123 = vmatprep.subr.bf16.mxu0 0
    %124 = vmatpush1.bf16.msra.mxu0 0
    %125 = vmatprep.subr.bf16.mxu0 0
    %126 = vmatpush1.bf16.msra.mxu0 0
    %127 = vmatprep.subr.bf16.mxu0 0
    %128 = vmatpush1.bf16.msra.mxu0 0
    %129 = vmatprep.mubr.bf16.mxu0 0
    %130 = vmatmul.mubr.bf16.gmra.mrb[0].mxu0 %v95
    %v131 = vpop.f32.mrb[0].mxu0
    %v132 = vadd.f32 %v67, %v131
    %v133 = vpop.f32.mrb[0].mxu0
    %v134 = vpop.f32.mrb[0].mxu0
    %v135 = vpop.f32.mrb[0].mxu0
    %136 = vdwg.mxu0
    %vm137 = vcmask 261120
    %v138 = vsel %vm137, %v132, 0.0
    %139 = vadd.xlane.f32.xlu0 %v138
    %v140 = vpop.xlane.xlu0 %139
    %v141 = vrcp.pop 32.0
    %v142 = vmul.f32 %v140, %v141
    %v143 = vsub.f32 %v132, %v142
    %v144 = vmul.f32 %v143, %v143
    %v145 = vsel %vm137, %v144, 0.0
    %146 = vadd.xlane.f32.xlu0 %v145
    %v147 = vpop.xlane.xlu0 %146
    %v148 = vmul.f32 %v147, %v141
    %v149 = vadd.f32 %v148, 1e-05
    %v150 = vrsqrt.pop %v149
    %v151 = vmul.f32 %v143, %v150
    %v152 = vld [vmem:[%s3] sm:$0x1]
    %v154 = vlaneseq
    %v155 = vshrl.u32 %v154, 7
    %v156 = vsub.s32 0, %v155
    %v157 = vrot.slane %v152, %v156
    %v159 = vmul.f32 %v151, %v157
    %v160 = vld [vmem:[%s4] sm:$0x1]
    %v162 = vlaneseq
    %v163 = vshrl.u32 %v162, 7
    %v164 = vsub.s32 0, %v163
    %v165 = vrot.slane %v160, %v164
    %v167 = vadd.f32 %v159, %v165
    %v168 = vtanh.pop %v167
    %v169 = vpack.c.bf16 %v168, %v168
    %v170 = vld [vmem:[%s5] sm:$0xf]
    %v171 = vld [vmem:[%s5 + $0x4] sm:$0xf]
    %v172 = vld [vmem:[%s5 + $0x8] sm:$0xf]
    %v173 = vld [vmem:[%s5 + $0xc] sm:$0xf]
    %v174 = vld [vmem:[%s6] sm:$0x1]
    %v176 = vlaneseq
    %v177 = vshrl.u32 %v176, 7
    %v178 = vsub.s32 0, %v177
    %v179 = vrot.slane %v174, %v178
    %v185 = vunpack.c.l.b16 %v170
    %v186 = vunpack.c.l.b16 %v171
    %v187 = vunpack.c.l.b16 %v172
    %v188 = vunpack.c.l.b16 %v173
    %v189 = vpack.c.b16 %v186, %v185
    %v190 = vpack.c.b16 %v188, %v187
    %v194 = vsel %vm137, %v169, 0
    %196 = vmatprep.subr.bf16.mxu0 0
    %197 = vmatpush1.bf16.msra.mxu0 %v189
    %198 = vmatprep.subr.bf16.mxu0 0
    %199 = vmatpush1.bf16.msra.mxu0 %v190
    %200 = vmatprep.subr.bf16.mxu0 0
    %201 = vmatpush1.bf16.msra.mxu0 0
    %202 = vmatprep.subr.bf16.mxu0 0
    %203 = vmatpush1.bf16.msra.mxu0 0
    %204 = vmatprep.subr.bf16.mxu0 0
    %205 = vmatpush1.bf16.msra.mxu0 0
    %206 = vmatprep.subr.bf16.mxu0 0
    %207 = vmatpush1.bf16.msra.mxu0 0
    %208 = vmatprep.subr.bf16.mxu0 0
    %209 = vmatpush1.bf16.msra.mxu0 0
    %210 = vmatprep.subr.bf16.mxu0 0
    %211 = vmatpush1.bf16.msra.mxu0 0
    %212 = vmatprep.subr.bf16.mxu0 0
    %213 = vmatpush1.bf16.msra.mxu0 0
    %214 = vmatprep.subr.bf16.mxu0 0
    %215 = vmatpush1.bf16.msra.mxu0 0
    %216 = vmatprep.subr.bf16.mxu0 0
    %217 = vmatpush1.bf16.msra.mxu0 0
    %218 = vmatprep.subr.bf16.mxu0 0
    %219 = vmatpush1.bf16.msra.mxu0 0
    %220 = vmatprep.subr.bf16.mxu0 0
    %221 = vmatpush1.bf16.msra.mxu0 0
    %222 = vmatprep.subr.bf16.mxu0 0
    %223 = vmatpush1.bf16.msra.mxu0 0
    %224 = vmatprep.subr.bf16.mxu0 0
    %225 = vmatpush1.bf16.msra.mxu0 0
    %226 = vmatprep.subr.bf16.mxu0 0
    %227 = vmatpush1.bf16.msra.mxu0 0
    %228 = vmatprep.mubr.bf16.mxu0 0
    %229 = vmatmul.mubr.bf16.gmra.mrb[0].mxu0 %v194
    %v230 = vpop.f32.mrb[0].mxu0
    %v231 = vadd.f32 %v179, %v230
    %v232 = vpop.f32.mrb[0].mxu0
    %v233 = vpop.f32.mrb[0].mxu0
    %v234 = vpop.f32.mrb[0].mxu0
    %235 = vdwg.mxu0
    %v236 = vmax.f32 %v231, 0.0
    %v237 = vpack.c.bf16 %v236, %v236
    %v238 = vld [vmem:[%s7] sm:$0xf]
    %v239 = vld [vmem:[%s7 + $0x4] sm:$0xf]
    %v240 = vld [vmem:[%s7 + $0x8] sm:$0xf]
    %v241 = vld [vmem:[%s7 + $0xc] sm:$0xf]
    %v242 = vld [vmem:[%s8] sm:$0x1]
    %v244 = vlaneseq
    %v245 = vshrl.u32 %v244, 7
    %v246 = vsub.s32 0, %v245
    %v247 = vrot.slane %v242, %v246
    %v253 = vunpack.c.l.b16 %v238
    %v254 = vunpack.c.l.b16 %v239
    %v255 = vunpack.c.l.b16 %v240
    %v256 = vunpack.c.l.b16 %v241
    %v257 = vpack.c.b16 %v254, %v253
    %v258 = vpack.c.b16 %v256, %v255
    %v262 = vsel %vm137, %v237, 0
    %264 = vmatprep.subr.bf16.mxu0 0
    %265 = vmatpush1.bf16.msra.mxu0 %v257
    %266 = vmatprep.subr.bf16.mxu0 0
    %267 = vmatpush1.bf16.msra.mxu0 %v258
    %268 = vmatprep.subr.bf16.mxu0 0
    %269 = vmatpush1.bf16.msra.mxu0 0
    %270 = vmatprep.subr.bf16.mxu0 0
    %271 = vmatpush1.bf16.msra.mxu0 0
    %272 = vmatprep.subr.bf16.mxu0 0
    %273 = vmatpush1.bf16.msra.mxu0 0
    %274 = vmatprep.subr.bf16.mxu0 0
    %275 = vmatpush1.bf16.msra.mxu0 0
    %276 = vmatprep.subr.bf16.mxu0 0
    %277 = vmatpush1.bf16.msra.mxu0 0
    %278 = vmatprep.subr.bf16.mxu0 0
    %279 = vmatpush1.bf16.msra.mxu0 0
    %280 = vmatprep.subr.bf16.mxu0 0
    %281 = vmatpush1.bf16.msra.mxu0 0
    %282 = vmatprep.subr.bf16.mxu0 0
    %283 = vmatpush1.bf16.msra.mxu0 0
    %284 = vmatprep.subr.bf16.mxu0 0
    %285 = vmatpush1.bf16.msra.mxu0 0
    %286 = vmatprep.subr.bf16.mxu0 0
    %287 = vmatpush1.bf16.msra.mxu0 0
    %288 = vmatprep.subr.bf16.mxu0 0
    %289 = vmatpush1.bf16.msra.mxu0 0
    %290 = vmatprep.subr.bf16.mxu0 0
    %291 = vmatpush1.bf16.msra.mxu0 0
    %292 = vmatprep.subr.bf16.mxu0 0
    %293 = vmatpush1.bf16.msra.mxu0 0
    %294 = vmatprep.subr.bf16.mxu0 0
    %295 = vmatpush1.bf16.msra.mxu0 0
    %296 = vmatprep.mubr.bf16.mxu0 0
    %297 = vmatmul.mubr.bf16.gmra.mrb[0].mxu0 %v262
    %v298 = vpop.f32.mrb[0].mxu0
    %v299 = vadd.f32 %v247, %v298
    %v300 = vpop.f32.mrb[0].mxu0
    %v301 = vpop.f32.mrb[0].mxu0
    %v302 = vpop.f32.mrb[0].mxu0
    %303 = vdwg.mxu0
    %v304 = vmax.f32 %v299, 0.0
    %v305 = vpack.c.bf16 %v304, %v304
    %v306 = vld [vmem:[%s9] sm:$0xf]
    %v307 = vld [vmem:[%s9 + $0x4] sm:$0xf]
    %v308 = vld [vmem:[%s9 + $0x8] sm:$0xf]
    %v309 = vld [vmem:[%s9 + $0xc] sm:$0xf]
    %v310 = vld [vmem:[%s10] sm:$0x1]
    %v312 = vlaneseq
    %v313 = vshrl.u32 %v312, 7
    %v314 = vsub.s32 0, %v313
    %v315 = vrot.slane %v310, %v314
    %v321 = vunpack.c.l.b16 %v306
    %v322 = vunpack.c.l.b16 %v307
    %v323 = vunpack.c.l.b16 %v308
    %v324 = vunpack.c.l.b16 %v309
    %v325 = vpack.c.b16 %v322, %v321
    %v326 = vpack.c.b16 %v324, %v323
    %v330 = vsel %vm137, %v305, 0
    %332 = vmatprep.subr.bf16.mxu0 0
    %333 = vmatpush1.bf16.msra.mxu0 %v325
    %334 = vmatprep.subr.bf16.mxu0 0
    %335 = vmatpush1.bf16.msra.mxu0 %v326
    %336 = vmatprep.subr.bf16.mxu0 0
    %337 = vmatpush1.bf16.msra.mxu0 0
    %338 = vmatprep.subr.bf16.mxu0 0
    %339 = vmatpush1.bf16.msra.mxu0 0
    %340 = vmatprep.subr.bf16.mxu0 0
    %341 = vmatpush1.bf16.msra.mxu0 0
    %342 = vmatprep.subr.bf16.mxu0 0
    %343 = vmatpush1.bf16.msra.mxu0 0
    %344 = vmatprep.subr.bf16.mxu0 0
    %345 = vmatpush1.bf16.msra.mxu0 0
    %346 = vmatprep.subr.bf16.mxu0 0
    %347 = vmatpush1.bf16.msra.mxu0 0
    %348 = vmatprep.subr.bf16.mxu0 0
    %349 = vmatpush1.bf16.msra.mxu0 0
    %350 = vmatprep.subr.bf16.mxu0 0
    %351 = vmatpush1.bf16.msra.mxu0 0
    %352 = vmatprep.subr.bf16.mxu0 0
    %353 = vmatpush1.bf16.msra.mxu0 0
    %354 = vmatprep.subr.bf16.mxu0 0
    %355 = vmatpush1.bf16.msra.mxu0 0
    %356 = vmatprep.subr.bf16.mxu0 0
    %357 = vmatpush1.bf16.msra.mxu0 0
    %358 = vmatprep.subr.bf16.mxu0 0
    %359 = vmatpush1.bf16.msra.mxu0 0
    %360 = vmatprep.subr.bf16.mxu0 0
    %361 = vmatpush1.bf16.msra.mxu0 0
    %362 = vmatprep.subr.bf16.mxu0 0
    %363 = vmatpush1.bf16.msra.mxu0 0
    %364 = vmatprep.mubr.bf16.mxu0 0
    %365 = vmatmul.mubr.bf16.gmra.mrb[0].mxu0 %v330
    %v366 = vpop.f32.mrb[0].mxu0
    %v367 = vadd.f32 %v315, %v366
    %v368 = vpop.f32.mrb[0].mxu0
    %v369 = vpop.f32.mrb[0].mxu0
    %v370 = vpop.f32.mrb[0].mxu0
    %371 = vdwg.mxu0
    %v372 = vtanh.pop %v367
    %373 = vst [vmem:[#allocation5] sm:$0xff] %v372
    // Predicated region
    $region50: #{tpu_custom_call.1} parent=1 // pred_check
      _
    $region51: #{tpu_custom_call.1} parent=1 // pred_check_branch
      %375 = sbr.rel (0) target = $region53
    $region52: #{tpu_custom_call.1} parent=1 // pred_region
      %s377 = ssub.s32 128, 128
      %378 = vsyncadd [#allocation4], %s377
      %s380 = sshll.u32 [#allocation5], 4
      %s381 = int_to_ptr.vmem [resolvable:$true] %s380
      %383 = dma.vmem_to_hbm [thread:$0]  %s381, 128, %s11, [#allocation4]
    $region53: #{tpu_custom_call.1} parent=1 // pred_fallthru
      _
    // Predicated region
    $region54: #{tpu_custom_call.1} parent=1 // pred_check
      _
    $region55: #{tpu_custom_call.1} parent=1 // pred_check_branch
      %385 = sbr.rel (0) target = $region57
    $region56: #{tpu_custom_call.1} parent=1 // pred_region
      %386 = dma.done [#allocation4], 128
    $region57: #{tpu_custom_call.1} parent=1 // pred_fallthru
      _
    %387 = vsyncpa [#allocation3], 1
    %388 = vsyncpa [#allocation4], 1

</llo_original>
